<compile_context>
chip_gen: v7x
topology: tpu7x:2x2x1
jax: 0.10.0
libtpu: 0.0.40
codegen_flags: <defaults>
</compile_context>

<pallas_src>
import functools

import jax
import jax.numpy as jnp
from jax import lax
from jax.experimental import pallas as pl
from jax.experimental.pallas import tpu as pltpu

_LANES = 128
_EPS_LO = 1e-8
_EPS_HI = 1.0 - 1e-8   # == 1.0 in float32, matching torch.clamp(float32) exactly


def _round_up(x, m):
    return (x + m - 1) // m * m


def _weighted_bce_kernel(pred_ref, true_ref, posw_ref, negw_ref, out_ref, *,
                         block_rows, width, valid_elems, padded_elems,
                         hard_labels):
    # Upcast in-kernel (inputs may be bf16 / int); all math in f32.
    p = pred_ref[...].astype(jnp.float32)
    t = true_ref[...].astype(jnp.float32)
    p = jnp.clip(p, _EPS_LO, _EPS_HI)

    if hard_labels:
        # {0,1}-label select trick: one EUP log per element instead of two.
        pos = t > 0.5
        w_sel = jnp.where(pos, posw_ref[...], negw_ref[...])   # (1,W) -> (TM,W)
        p_sel = jnp.where(pos, p, 1.0 - p)
        loss = w_sel * jnp.log(p_sel)
    else:
        # Module formula verbatim (exact also for soft labels).  Two logs per
        # element; the kernel remains HBM-bound so the extra EUP work is hidden.
        loss = (posw_ref[...] * (t * jnp.log(p))
                + negw_ref[...] * ((1.0 - t) * jnp.log(1.0 - p)))

    if padded_elems != valid_elems:
        # Batch padding is a suffix of the flattened row-major layout, so a
        # flat-index compare masks exactly the padded elements.
        row0 = pl.program_id(0) * block_rows
        rid = lax.broadcasted_iota(jnp.int32, (block_rows, width), 0) + row0
        cid = lax.broadcasted_iota(jnp.int32, (block_rows, width), 1)
        flat = rid * width + cid                 # assumes total elems < 2^31
        loss = jnp.where(flat < valid_elems, loss, 0.0)

    # (TM, W) -> (8, W) per-tile partial sums: reduce over the leading axis
    # only (cheap vreg adds); output stays lane-dense (unmasked stores).
    out_ref[...] = jnp.sum(loss.reshape(block_rows // 8, 8, width), axis=0)


def weighted_bce(pred, true, pos_w, neg_w, *, hard_labels=False,
                 max_block_rows=8192, vmem_input_budget=16 << 20):
    """Pallas TPU implementation of weighted_BCE.forward."""
    N, C = pred.shape
    assert true.shape == (N, C)
    total = N * C                                  # mean denominator

    # ---- class padding: pad C so the per-class weight pattern tiles the
    #      128-wide lane dimension exactly ---------------------------------
    if C <= _LANES:
        c_pad = 1 << (C - 1).bit_length() if C > 1 else 1   # next pow2 <= 128
        width = _LANES
    else:
        c_pad = _round_up(C, _LANES)
        width = c_pad

    pos_w = pos_w.reshape(C).astype(jnp.float32)
    neg_w = neg_w.reshape(C).astype(jnp.float32)
    if c_pad != C:
        # Padded classes get weight 0 -> contribute exactly 0 to the sum.
        pos_w = jnp.pad(pos_w, (0, c_pad - C))
        neg_w = jnp.pad(neg_w, (0, c_pad - C))
        pred = jnp.pad(pred, ((0, 0), (0, c_pad - C)), constant_values=0.5)
        true = jnp.pad(true, ((0, 0), (0, c_pad - C)), constant_values=0.0)
    posw_row = jnp.tile(pos_w, width // c_pad).reshape(1, width)
    negw_row = jnp.tile(neg_w, width // c_pad).reshape(1, width)

    # ---- lane-dense reshape + batch padding to full row tiles -------------
    valid = N * c_pad                    # real (weight-carrying) element count
    rows = pl.cdiv(valid, width)
    # Block rows from a VMEM budget: 2 inputs x 2 pipeline buffers, f32-worst.
    cap_rows = max(8, (vmem_input_budget // (width * 4 * 2 * 2)) // 8 * 8)
    block_rows = min(max_block_rows, cap_rows, _round_up(rows, 8))
    rows_pad = _round_up(rows, block_rows)
    padded = rows_pad * width

    pred_flat = pred.reshape(-1)                   # caller dtype, no upcast
    true_flat = true.reshape(-1)
    if padded != valid:
        pred_flat = jnp.pad(pred_flat, (0, padded - valid), constant_values=0.5)
        true_flat = jnp.pad(true_flat, (0, padded - valid), constant_values=0.0)
    pred2 = pred_flat.reshape(rows_pad, width)
    true2 = true_flat.reshape(rows_pad, width)

    num_tiles = rows_pad // block_rows
    kernel = functools.partial(
        _weighted_bce_kernel,
        block_rows=block_rows, width=width,
        valid_elems=valid, padded_elems=padded,
        hard_labels=hard_labels)

    partials = pl.pallas_call(
        kernel,
        out_shape=jax.ShapeDtypeStruct((num_tiles * 8, width), jnp.float32),
        grid=(num_tiles,),
        in_specs=[
            pl.BlockSpec((block_rows, width), lambda i: (i, 0)),
            pl.BlockSpec((block_rows, width), lambda i: (i, 0)),
            pl.BlockSpec((1, width), lambda i: (0, 0)),
            pl.BlockSpec((1, width), lambda i: (0, 0)),
        ],
        out_specs=pl.BlockSpec((8, width), lambda i: (i, 0)),
        compiler_params=pltpu.CompilerParams(
            dimension_semantics=("parallel",),
            vmem_limit_bytes=32 * 1024 * 1024),
    )(pred2, true2, posw_row, negw_row)

    # Final tiny reduction + normalization in plain JAX.
    return -(jnp.sum(partials) / total)


def compute_class_weights(trues):
    """Plain-JAX glue mimicking weighted_BCE.__init__ weight computation."""
    num_samples = trues.shape[0]
    pos = jnp.count_nonzero(trues, axis=0).astype(jnp.float32)
    neg = num_samples - pos
    pos_w = jnp.where(pos > 0, num_samples / jnp.maximum(pos, 1.0), jnp.inf)
    neg_w = num_samples / neg
    # replace inf (classes with no positives) by max finite positive weight
    max_finite = jnp.max(jnp.where(jnp.isinf(pos_w), -jnp.inf, pos_w))
    pos_w = jnp.where(jnp.isinf(pos_w), max_finite, pos_w)
    return pos_w, neg_w


def _reference(pred, true, pos_w, neg_w):
    p = jnp.clip(pred.astype(jnp.float32), _EPS_LO, _EPS_HI)
    t = true.astype(jnp.float32)
    loss = pos_w[None, :] * (t * jnp.log(p)) + \
        neg_w[None, :] * ((1.0 - t) * jnp.log(1.0 - p))
    return -jnp.mean(loss)


if __name__ == "__main__":
    key = jax.random.PRNGKey(0)

    def run_case(case_key, n, c, hard_labels):
        k_init, k_true, k_pred = jax.random.split(case_key, 3)
        # Deterministic synthetic "train_queue" targets for __init__ weights.
        init_trues = (jax.random.uniform(k_init, (64, c)) < 0.3).astype(jnp.float32)
        pos_w, neg_w = compute_class_weights(init_trues)
        # Forward inputs: pred are probabilities in (0,1), true are {0,1}.
        pred = jax.random.uniform(k_pred, (n, c), dtype=jnp.float32,
                                  minval=0.01, maxval=0.99)
        true = (jax.random.uniform(k_true, (n, c)) < 0.4).astype(jnp.float32)

        out = jax.block_until_ready(
            weighted_bce(pred, true, pos_w, neg_w, hard_labels=hard_labels))
        ref = _reference(pred, true, pos_w, neg_w)
        assert jnp.allclose(out, ref, rtol=1e-5, atol=1e-5), (n, c, out, ref)

    k1, k2, k3 = jax.random.split(key, 3)
    run_case(k1, 5, 4, False)   # spec-sized (batch=5, classes=4), exact formula
    run_case(k2, 16, 8, True)   # pow-2 classes, hard-label one-log fast path
    run_case(k3, 37, 6, False)  # non-pow-2 classes: class + batch padding paths
    print("KERNEL_OK")
</pallas_src>

<mosaic_0001>
module attributes {stable_mosaic.version = 11 : i64} {
  func.func @_weighted_bce_kernel(%arg0: i32, %arg1: memref<8x128xf32, #tpu.memory_space<vmem>>, %arg2: memref<8x128xf32, #tpu.memory_space<vmem>>, %arg3: memref<1x128xf32, #tpu.memory_space<vmem>>, %arg4: memref<1x128xf32, #tpu.memory_space<vmem>>, %arg5: memref<8x128xf32, #tpu.memory_space<vmem>>) attributes {dimension_semantics = [#tpu.dimension_semantics<parallel>], iteration_bounds = array<i64: 1>, scalar_prefetch = 0 : i64, scratch_operands = 0 : i64, tpu.core_type = #tpu.core_type<tc>, window_params = [{transform_indices = @transform_0, window_bounds = array<i64: 8, 128>}, {transform_indices = @transform_1, window_bounds = array<i64: 8, 128>}, {pipeline_mode = #tpu.pipeline_mode<synchronous>, transform_indices = @transform_2, window_bounds = array<i64: 1, 128>}, {pipeline_mode = #tpu.pipeline_mode<synchronous>, transform_indices = @transform_3, window_bounds = array<i64: 1, 128>}, {transform_indices = @transform_4, window_bounds = array<i64: 8, 128>}]} {
    %c0 = arith.constant 0 : index
    %c0_0 = arith.constant 0 : index
    %0 = vector.load %arg1[%c0, %c0_0] : memref<8x128xf32, #tpu.memory_space<vmem>>, vector<8x128xf32>
    %c0_1 = arith.constant 0 : index
    %c0_2 = arith.constant 0 : index
    %1 = vector.load %arg2[%c0_1, %c0_2] : memref<8x128xf32, #tpu.memory_space<vmem>>, vector<8x128xf32>
    %cst = arith.constant 9.99999993E-9 : f32
    %cst_3 = arith.constant 1.000000e+00 : f32
    %2 = vector.broadcast %cst : f32 to vector<8x128xf32>
    %3 = arith.maximumf %2, %0 : vector<8x128xf32>
    %4 = vector.broadcast %cst_3 : f32 to vector<8x128xf32>
    %5 = arith.minimumf %4, %3 : vector<8x128xf32>
    %c0_4 = arith.constant 0 : index
    %c0_5 = arith.constant 0 : index
    %6 = vector.load %arg3[%c0_4, %c0_5] : memref<1x128xf32, #tpu.memory_space<vmem>>, vector<1x128xf32>
    %7 = math.log %5 : vector<8x128xf32>
    %8 = arith.mulf %1, %7 : vector<8x128xf32>
    %9 = vector.broadcast %6 : vector<1x128xf32> to vector<8x128xf32>
    %10 = arith.mulf %9, %8 : vector<8x128xf32>
    %c0_6 = arith.constant 0 : index
    %c0_7 = arith.constant 0 : index
    %11 = vector.load %arg4[%c0_6, %c0_7] : memref<1x128xf32, #tpu.memory_space<vmem>>, vector<1x128xf32>
    %cst_8 = arith.constant 1.000000e+00 : f32
    %12 = vector.broadcast %cst_8 : f32 to vector<8x128xf32>
    %13 = arith.subf %12, %1 : vector<8x128xf32>
    %cst_9 = arith.constant 1.000000e+00 : f32
    %14 = vector.broadcast %cst_9 : f32 to vector<8x128xf32>
    %15 = arith.subf %14, %5 : vector<8x128xf32>
    %16 = math.log %15 : vector<8x128xf32>
    %17 = arith.mulf %13, %16 : vector<8x128xf32>
    %18 = vector.broadcast %11 : vector<1x128xf32> to vector<8x128xf32>
    %19 = arith.mulf %18, %17 : vector<8x128xf32>
    %20 = arith.addf %10, %19 : vector<8x128xf32>
    %c8_i32 = arith.constant 8 : i32
    %21 = arith.muli %arg0, %c8_i32 : i32
    %22 = tpu.iota {dimensions = array<i32: 0>} : vector<8x128xi32>
    %23 = vector.broadcast %21 : i32 to vector<8x128xi32>
    %24 = arith.addi %22, %23 : vector<8x128xi32>
    %25 = tpu.iota {dimensions = array<i32: 1>} : vector<8x128xi32>
    %c128_i32 = arith.constant 128 : i32
    %26 = vector.broadcast %c128_i32 : i32 to vector<8x128xi32>
    %27 = arith.muli %24, %26 : vector<8x128xi32>
    %28 = arith.addi %27, %25 : vector<8x128xi32>
    %c20_i32 = arith.constant 20 : i32
    %29 = vector.broadcast %c20_i32 : i32 to vector<8x128xi32>
    %30 = arith.cmpi slt, %28, %29 : vector<8x128xi32>
    %cst_10 = arith.constant 0.000000e+00 : f32
    %31 = vector.broadcast %cst_10 : f32 to vector<8x128xf32>
    %32 = arith.select %30, %20, %31 : vector<8x128xi1>, vector<8x128xf32>
    %33 = vector.shape_cast %32 : vector<8x128xf32> to vector<1x8x128xf32>
    %cst_11 = arith.constant dense<0.000000e+00> : vector<8x128xf32>
    %34 = vector.multi_reduction <add>, %33, %cst_11 [0] : vector<1x8x128xf32> to vector<8x128xf32>
    %c0_12 = arith.constant 0 : index
    %c0_13 = arith.constant 0 : index
    %35 = vector.load %arg5[%c0_12, %c0_13] : memref<8x128xf32, #tpu.memory_space<vmem>>, vector<8x128xf32>
    tpu.vector_store %arg5[%c0_12, %c0_13], %34 {strides = array<i32>} : memref<8x128xf32, #tpu.memory_space<vmem>>, vector<8x128xf32>,
    return
  }
  func.func @transform_0(%arg0: i32) -> (i32, i32) {
    %c0_i32 = arith.constant 0 : i32
    %c0_i32_0 = arith.constant 0 : i32
    return %arg0, %c0_i32 : i32, i32
  }
  func.func @transform_1(%arg0: i32) -> (i32, i32) {
    %c0_i32 = arith.constant 0 : i32
    %c0_i32_0 = arith.constant 0 : i32
    return %arg0, %c0_i32 : i32, i32
  }
  func.func @transform_2(%arg0: i32) -> (i32, i32) {
    %c0_i32 = arith.constant 0 : i32
    %c0_i32_0 = arith.constant 0 : i32
    %c0_i32_1 = arith.constant 0 : i32
    return %c0_i32, %c0_i32_0 : i32, i32
  }
  func.func @transform_3(%arg0: i32) -> (i32, i32) {
    %c0_i32 = arith.constant 0 : i32
    %c0_i32_0 = arith.constant 0 : i32
    %c0_i32_1 = arith.constant 0 : i32
    return %c0_i32, %c0_i32_0 : i32, i32
  }
  func.func @transform_4(%arg0: i32) -> (i32, i32) {
    %c0_i32 = arith.constant 0 : i32
    %c0_i32_0 = arith.constant 0 : i32
    return %arg0, %c0_i32 : i32, i32
  }
}

</mosaic_0001>

<llo_original>
// kernel: tpu_custom_call.1
$region0: #{tpu_custom_call.1}
  #allocation0 [shape = 'u32[]', space=smem, size = 0x4, offset = 0x4, fixed_abs, tag = 'smem constant byte address 0x4 - core index']
  #allocation1 [shape = 'u32[144,128]{1,0:T(1,128)}', space=vmem, size = 0x12000, scoped, tag = 'internal scratch']
  %s0 = inlined_call_operand.hbm [shape: f32[8,128], index: 0, kind: input, shape index: {}]
  %s1 = inlined_call_operand.hbm [shape: f32[8,128], index: 1, kind: input, shape index: {}]
  %s2 = inlined_call_operand.vmem [shape: f32[1,128], index: 2, kind: input, shape index: {}]
  %s3 = inlined_call_operand.vmem [shape: f32[1,128], index: 3, kind: input, shape index: {}]
  %s4 = inlined_call_operand.hbm [shape: f32[8,128], index: 4, kind: output, shape index: {}]
  %s5 = sld [smem:[#allocation0]]
  $region34: #{tpu_custom_call.1} parent=0
    _
  %s7 = ssub.s32 1, %s5
  %s8 = scalar_select 0, %s7, %s5
  $region1: #{tpu_custom_call.1} parent=0
    #allocation2 [shape = 'u8[4096]{0}', space=vmem, size = 0x1000, scoped, tag = 'input window, operand 0, single buffered']
    #allocation3 [shape = 's32[1]{0}', space=sflag, size = 0x4, scoped, tag = 'scoped memory for tpu_custom_call.1']
    #allocation4 [shape = 's32[1]{0}', space=sflag, size = 0x4, scoped, tag = 'scoped memory for tpu_custom_call.1']
    #allocation5 [shape = 'u8[4096]{0}', space=vmem, size = 0x1000, scoped, tag = 'input window, operand 1, single buffered']
    #allocation6 [shape = 's32[1]{0}', space=sflag, size = 0x4, scoped, tag = 'scoped memory for tpu_custom_call.1']
    #allocation7 [shape = 'u8[4096]{0}', space=vmem, size = 0x1000, scoped, tag = 'output window, operand 0, single buffered']
    %9 = vsyncpa [#allocation3], 0
    %10 = vsyncpa [#allocation6], 0
    %11 = vsyncpa [#allocation4], 0
    // Predicated region
    $region2: #{tpu_custom_call.1} parent=1 // pred_check
      _
    $region3: #{tpu_custom_call.1} parent=1 // pred_check_branch
      %13 = sbr.rel (0) target = $region5
    $region4: #{tpu_custom_call.1} parent=1 // pred_region
      %s15 = ssub.s32 128, 128
      %16 = vsyncadd [#allocation3], %s15
      %s18 = sshll.u32 [#allocation2], 4
      %s19 = int_to_ptr.vmem [resolvable:$true] %s18
      %21 = dma.hbm_to_vmem [thread:$0]  %s0, 128, %s19, [#allocation3]
    $region5: #{tpu_custom_call.1} parent=1 // pred_fallthru
      _
    // Predicated region
    $region6: #{tpu_custom_call.1} parent=1 // pred_check
      _
    $region7: #{tpu_custom_call.1} parent=1 // pred_check_branch
      %23 = sbr.rel (0) target = $region9
    $region8: #{tpu_custom_call.1} parent=1 // pred_region
      %s25 = ssub.s32 128, 128
      %26 = vsyncadd [#allocation6], %s25
      %s28 = sshll.u32 [#allocation5], 4
      %s29 = int_to_ptr.vmem [resolvable:$true] %s28
      %31 = dma.hbm_to_vmem [thread:$0]  %s1, 128, %s29, [#allocation6]
    $region9: #{tpu_custom_call.1} parent=1 // pred_fallthru
      _
    // Predicated region
    $region10: #{tpu_custom_call.1} parent=1 // pred_check
      _
    $region11: #{tpu_custom_call.1} parent=1 // pred_check_branch
      %33 = sbr.rel (0) target = $region13
    $region12: #{tpu_custom_call.1} parent=1 // pred_region
      _
    $region13: #{tpu_custom_call.1} parent=1 // pred_fallthru
      _
    // Predicated region
    $region14: #{tpu_custom_call.1} parent=1 // pred_check
      _
    $region15: #{tpu_custom_call.1} parent=1 // pred_check_branch
      %35 = sbr.rel (0) target = $region17
    $region16: #{tpu_custom_call.1} parent=1 // pred_region
      _
    $region17: #{tpu_custom_call.1} parent=1 // pred_fallthru
      _
    // Predicated region
    $region18: #{tpu_custom_call.1} parent=1 // pred_check
      _
    $region19: #{tpu_custom_call.1} parent=1 // pred_check_branch
      %37 = sbr.rel (0) target = $region21
    $region20: #{tpu_custom_call.1} parent=1 // pred_region
      %38 = dma.done [#allocation3], 128
    $region21: #{tpu_custom_call.1} parent=1 // pred_fallthru
      _
    // Predicated region
    $region22: #{tpu_custom_call.1} parent=1 // pred_check
      _
    $region23: #{tpu_custom_call.1} parent=1 // pred_check_branch
      %40 = sbr.rel (0) target = $region25
    $region24: #{tpu_custom_call.1} parent=1 // pred_region
      %41 = dma.done [#allocation6], 128
    $region25: #{tpu_custom_call.1} parent=1 // pred_fallthru
      _
    %v42 = vld [vmem:[#allocation2] sm:$0xff]
    %v43 = vld [vmem:[#allocation5] sm:$0xff]
    %v44 = vmax.f32 %v42, 1e-08
    %v45 = vmin.f32 %v44, 1.0
    %v46 = vld [vmem:[%s2] sm:$0x1]
    %v47 = vlog2.pop %v45
    %v48 = vmul.f32 %v47, 0.6931472
    %v49 = vmul.f32 %v43, %v48
    %v51 = vlaneseq
    %v52 = vshrl.u32 %v51, 7
    %v53 = vsub.s32 0, %v52
    %v54 = vrot.slane %v46, %v53
    %v56 = vmul.f32 %v54, %v49
    %v57 = vld [vmem:[%s3] sm:$0x1]
    %v58 = vsub.f32 1.0, %v43
    %v59 = vsub.f32 1.0, %v45
    %v60 = vlog2.pop %v59
    %v61 = vmul.f32 %v60, 0.6931472
    %v62 = vmul.f32 %v58, %v61
    %v64 = vlaneseq
    %v65 = vshrl.u32 %v64, 7
    %v66 = vsub.s32 0, %v65
    %v67 = vrot.slane %v57, %v66
    %v69 = vmul.f32 %v67, %v62
    %v70 = vadd.f32 %v56, %v69
    %s71 = smul.u32 0, 8
    %v72 = vlaneseq
    %v73 = vshrl.u32 %v72, 7
    %v74 = vstv %s71
    %v75 = vadd.s32 %v73, %v74
    %v76 = vlaneseq
    %v77 = vand.u32 %v76, 127
    %v78 = vmul.u32 %v75, 128
    %v79 = vadd.s32 %v78, %v77
    %vm80 = vcmp.lt.s32.totalorder %v79, 20
    %v81 = vsel %vm80, %v70, 0.0
    %v82 = vadd.f32 %v81, 0.0
    %83 = vst [vmem:[#allocation7] sm:$0xff] %v82
    // Predicated region
    $region26: #{tpu_custom_call.1} parent=1 // pred_check
      _
    $region27: #{tpu_custom_call.1} parent=1 // pred_check_branch
      %85 = sbr.rel (0) target = $region29
    $region28: #{tpu_custom_call.1} parent=1 // pred_region
      %s87 = ssub.s32 128, 128
      %88 = vsyncadd [#allocation4], %s87
      %s90 = sshll.u32 [#allocation7], 4
      %s91 = int_to_ptr.vmem [resolvable:$true] %s90
      %93 = dma.vmem_to_hbm [thread:$0]  %s91, 128, %s4, [#allocation4]
    $region29: #{tpu_custom_call.1} parent=1 // pred_fallthru
      _
    // Predicated region
    $region30: #{tpu_custom_call.1} parent=1 // pred_check
      _
    $region31: #{tpu_custom_call.1} parent=1 // pred_check_branch
      %95 = sbr.rel (0) target = $region33
    $region32: #{tpu_custom_call.1} parent=1 // pred_region
      %96 = dma.done [#allocation4], 128
    $region33: #{tpu_custom_call.1} parent=1 // pred_fallthru
      _
    %97 = vsyncpa [#allocation3], 1
    %98 = vsyncpa [#allocation6], 1
    %99 = vsyncpa [#allocation4], 1

</llo_original>
